<compile_context>
chip_gen: v7x
topology: tpu7x:2x2x1
jax: 0.10.0
libtpu: 0.0.40
codegen_flags: <defaults>
</compile_context>

<pallas_src>
import functools

import jax
import jax.numpy as jnp
from jax.experimental import pallas as pl
from jax.experimental.pallas import tpu as pltpu


# ----------------------------------------------------------------------------
# Fused kernel (one sample per grid step):
#   conv2 (1x1, MXU bf16) -> SE squeeze (lane reduce) -> SE excite (tiny f32
#   mat-vecs + sigmoid) -> channel scale (VPU broadcast) + residual + ReLU ->
#   global average pool (lane reduce) -> fused attribute heads (VPU + sublane
#   reduce into a lane-dense padded output row).
# ----------------------------------------------------------------------------
def _fused_block_kernel(x_ref, wconv_ref, w1_ref, w2_ref, hw_ref, hb_ref, o_ref):
    x = x_ref[...]                                            # (C, HW)  f32
    inv_hw = 1.0 / x.shape[-1]                                # static

    # Pointwise conv2: single lane-dense MXU matmul, bf16 operands, f32 acc.
    conv = jnp.dot(wconv_ref[...], x.astype(jnp.bfloat16),
                   preferred_element_type=jnp.float32)        # (C, HW) f32

    # --- SEBlock --------------------------------------------------------------
    # Squeeze: spatial mean per channel (lane reduction — XLU slot).
    y = jnp.sum(conv, axis=-1, keepdims=True) * inv_hw        # (C, 1)
    # Excite: fc -> ReLU -> fc -> sigmoid (tiny f32 mat-vecs, weights (out,in)).
    h = jnp.maximum(
        jnp.dot(w1_ref[...], y, preferred_element_type=jnp.float32), 0.0)  # (Cr,1)
    s = jax.nn.sigmoid(
        jnp.dot(w2_ref[...], h, preferred_element_type=jnp.float32))       # (C,1)

    # --- Scale (VPU lane broadcast) + residual + ReLU, fused; then avg pool ---
    act = jnp.maximum(conv * s + x, 0.0)                      # (C, HW) f32
    feat = jnp.sum(act, axis=-1, keepdims=True) * inv_hw      # (C, 1)

    # --- Fused attribute heads (lane-dense padded output row) -----------------
    # out[0, j] = sum_c feat[c] * W[c, j] + b[j]   (VPU mul + sublane reduce)
    o_ref[...] = (jnp.sum(feat * hw_ref[...], axis=0, keepdims=True)
                  + hb_ref[...]).astype(o_ref.dtype)          # (1, S_pad)


# ----------------------------------------------------------------------------
# Forward pass wrapper (free reshapes only — no relayout pass before the call).
# ----------------------------------------------------------------------------
@functools.partial(jax.jit, static_argnames=("attribute_sizes",))
def attribute_predictor_forward(x_nchw, params, attribute_sizes):
    B, C, H, W = x_nchw.shape
    HW = H * W

    x = x_nchw.astype(jnp.float32).reshape(B, C, HW)          # natural layout

    wconv = params["w_conv2"]        # (C, C)     bf16  (MXU operand)
    w1 = params["se_w1"]             # (Cr, C)    f32
    w2 = params["se_w2"]             # (C, Cr)    f32
    heads_w = params["heads_w"]      # (C, S_pad) bf16  (pre-transposed, padded)
    heads_b = params["heads_b"]      # (1, S_pad) f32
    Cr = w1.shape[0]
    S_pad = heads_w.shape[1]

    flops = B * (2 * C * C * HW + 4 * C * Cr + 2 * C * S_pad + 6 * C * HW)
    bytes_accessed = (B * C * HW * 4 + B * S_pad * 4
                      + C * C * 2 + 2 * Cr * C * 4 + C * S_pad * 2 + S_pad * 4)

    out_padded = pl.pallas_call(
        _fused_block_kernel,
        out_shape=jax.ShapeDtypeStruct((B, 1, S_pad), jnp.float32),
        grid_spec=pltpu.PrefetchScalarGridSpec(
            num_scalar_prefetch=0,
            grid=(B,),
            in_specs=[
                pl.BlockSpec((None, C, HW), lambda b: (b, 0, 0)),   # x sample
                pl.BlockSpec((C, C), lambda b: (0, 0)),             # conv2 W
                pl.BlockSpec(w1.shape, lambda b: (0, 0)),           # SE fc1
                pl.BlockSpec(w2.shape, lambda b: (0, 0)),           # SE fc2
                pl.BlockSpec((C, S_pad), lambda b: (0, 0)),         # heads W
                pl.BlockSpec((1, S_pad), lambda b: (0, 0)),         # heads b
            ],
            out_specs=pl.BlockSpec((None, 1, S_pad), lambda b: (b, 0, 0)),
        ),
        compiler_params=pltpu.CompilerParams(
            dimension_semantics=("parallel",),       # samples shard over TCs
            vmem_limit_bytes=48 * 1024 * 1024,       # headroom under v7x 64MiB
        ),
        cost_estimate=pl.CostEstimate(
            flops=int(flops),
            transcendentals=int(B * C),
            bytes_accessed=int(bytes_accessed),
        ),
    )(x, wconv, w1, w2, heads_w, heads_b)

    all_heads = out_padded.reshape(B, S_pad)

    # Split the lane-dense padded slab into the per-attribute outputs.
    outputs, off = [], 0
    for s in attribute_sizes:
        outputs.append(all_heads[:, off:off + s])
        off += s
    return outputs


# ----------------------------------------------------------------------------
# Pure-JAX reference (same math + same bf16 quantization of MXU operands).
# ----------------------------------------------------------------------------
def _reference_forward(x_nchw, params, attribute_sizes):
    B, C, H, W = x_nchw.shape
    x = x_nchw.reshape(B, C, H * W).astype(jnp.float32)
    conv = jnp.einsum("oc,bcs->bos", params["w_conv2"], x.astype(jnp.bfloat16),
                      preferred_element_type=jnp.float32)
    y = conv.mean(-1)                                              # squeeze
    h = jnp.maximum(y @ params["se_w1"].T, 0.0)
    s = jax.nn.sigmoid(h @ params["se_w2"].T)
    feat = jnp.maximum(conv * s[:, :, None] + x, 0.0).mean(-1)     # (B, C)
    all_heads = feat @ params["heads_w"].astype(jnp.float32) + params["heads_b"]
    outputs, off = [], 0
    for sz in attribute_sizes:
        outputs.append(all_heads[:, off:off + sz])
        off += sz
    return outputs


# ----------------------------------------------------------------------------
# Deterministic parameter construction.
# ----------------------------------------------------------------------------
def make_params(key, channels, reduction, attribute_sizes, feature_dim):
    c_r = max(1, channels // reduction)
    n_heads = len(attribute_sizes)
    keys = jax.random.split(key, 3 + 2 * n_heads)

    w_conv2 = jax.random.normal(keys[0], (channels, channels), jnp.float32) * 0.05
    se_w1 = jax.random.normal(keys[1], (c_r, channels), jnp.float32) * 0.1
    se_w2 = jax.random.normal(keys[2], (channels, c_r), jnp.float32) * 0.1

    # Attribute heads: kaiming_normal_(weight, nonlinearity='relu') + default
    # nn.Linear bias init.  Concatenated, transposed to (D, S) and zero-padded
    # to a 128-lane-dense slab at build time (no in-kernel transposes).
    s_total = int(sum(attribute_sizes))
    s_pad = max(128, ((s_total + 127) // 128) * 128)
    std = (2.0 / feature_dim) ** 0.5
    bound = 1.0 / (feature_dim ** 0.5)
    ws, bs = [], []
    for i, size in enumerate(attribute_sizes):
        ws.append(jax.random.normal(keys[3 + 2 * i], (size, feature_dim),
                                    jnp.float32) * std)
        bs.append(jax.random.uniform(keys[4 + 2 * i], (size,), jnp.float32,
                                     minval=-bound, maxval=bound))
    w_cat = jnp.concatenate(ws, axis=0)                  # (S_total, D)
    b_cat = jnp.concatenate(bs, axis=0)                  # (S_total,)
    heads_w = jnp.zeros((feature_dim, s_pad), jnp.float32).at[:, :s_total].set(w_cat.T)
    heads_b = jnp.zeros((1, s_pad), jnp.float32).at[0, :s_total].set(b_cat)

    return {
        "w_conv2": w_conv2.astype(jnp.bfloat16),   # MXU operand -> bf16
        "se_w1": se_w1,
        "se_w2": se_w2,
        "heads_w": heads_w.astype(jnp.bfloat16),   # bf16 slab, halves DMA
        "heads_b": heads_b,
    }


if __name__ == "__main__":
    key = jax.random.PRNGKey(0)
    kx, kp = jax.random.split(key)

    B, C, H, W = 2, 32, 8, 8
    reduction = 16
    attribute_sizes = (3, 5, 7)
    feature_dim = C  # image_encoder_output_dim

    x = jax.random.normal(kx, (B, C, H, W), jnp.float32)
    params = make_params(kp, C, reduction, attribute_sizes, feature_dim)

    outputs = attribute_predictor_forward(x, params, attribute_sizes)
    outputs = [jax.block_until_ready(o) for o in outputs]

    refs = _reference_forward(x, params, attribute_sizes)

    assert len(outputs) == len(attribute_sizes)
    for o, r, s in zip(outputs, refs, attribute_sizes):
        assert o.shape == (B, s), (o.shape, (B, s))
        assert o.dtype == jnp.float32
        assert jnp.allclose(o, r, rtol=1e-3, atol=1e-3), \
            float(jnp.max(jnp.abs(o - r)))

    print("KERNEL_OK")
</pallas_src>

<mosaic_0001>
module attributes {stable_mosaic.version = 11 : i64} {
  func.func @_fused_block_kernel(%arg0: i32, %arg1: memref<1x32x64xf32, #tpu.memory_space<vmem>>, %arg2: memref<32x32xbf16, #tpu.memory_space<vmem>>, %arg3: memref<2x32xf32, #tpu.memory_space<vmem>>, %arg4: memref<32x2xf32, #tpu.memory_space<vmem>>, %arg5: memref<32x128xbf16, #tpu.memory_space<vmem>>, %arg6: memref<1x128xf32, #tpu.memory_space<vmem>>, %arg7: memref<1x1x128xf32, #tpu.memory_space<vmem>>) attributes {dimension_semantics = [#tpu.dimension_semantics<parallel>], iteration_bounds = array<i64: 2>, scalar_prefetch = 0 : i64, scratch_operands = 0 : i64, tpu.core_type = #tpu.core_type<tc>, window_params = [{transform_indices = @transform_0, window_bounds = array<i64: 1, 32, 64>}, {pipeline_mode = #tpu.pipeline_mode<synchronous>, transform_indices = @transform_1, window_bounds = array<i64: 32, 32>}, {pipeline_mode = #tpu.pipeline_mode<synchronous>, transform_indices = @transform_2, window_bounds = array<i64: 2, 32>}, {pipeline_mode = #tpu.pipeline_mode<synchronous>, transform_indices = @transform_3, window_bounds = array<i64: 32, 2>}, {pipeline_mode = #tpu.pipeline_mode<synchronous>, transform_indices = @transform_4, window_bounds = array<i64: 32, 128>}, {pipeline_mode = #tpu.pipeline_mode<synchronous>, transform_indices = @transform_5, window_bounds = array<i64: 1, 128>}, {transform_indices = @transform_6, window_bounds = array<i64: 1, 1, 128>}]} {
    %c0 = arith.constant 0 : index
    %c0_0 = arith.constant 0 : index
    %c0_1 = arith.constant 0 : index
    %0 = vector.load %arg1[%c0, %c0_0, %c0_1] : memref<1x32x64xf32, #tpu.memory_space<vmem>>, vector<1x32x64xf32>
    %1 = vector.shape_cast %0 : vector<1x32x64xf32> to vector<32x64xf32>
    %c0_2 = arith.constant 0 : index
    %c0_3 = arith.constant 0 : index
    %2 = vector.load %arg2[%c0_2, %c0_3] : memref<32x32xbf16, #tpu.memory_space<vmem>>, vector<32x32xbf16>
    %3 = arith.truncf %1 : vector<32x64xf32> to vector<32x64xbf16>
    %cst = arith.constant dense<0.000000e+00> : vector<32x64xf32>
    %4 = tpu.matmul %2, %3, %cst {dimension_numbers = #tpu.dot_dimension_numbers<[1], [0], [0], [1], [0, 0, 1, 1], [], []>} : vector<32x32xbf16>, vector<32x64xbf16>, vector<32x64xf32> -> vector<32x64xf32>
    %cst_4 = arith.constant dense<0.000000e+00> : vector<32xf32>
    %5 = vector.multi_reduction <add>, %4, %cst_4 [1] : vector<32x64xf32> to vector<32xf32>
    %6 = vector.shape_cast %5 : vector<32xf32> to vector<32x1xf32>
    %cst_5 = arith.constant 1.562500e-02 : f32
    %7 = vector.broadcast %cst_5 : f32 to vector<32x1xf32>
    %8 = arith.mulf %6, %7 : vector<32x1xf32>
    %c0_6 = arith.constant 0 : index
    %c0_7 = arith.constant 0 : index
    %9 = vector.load %arg3[%c0_6, %c0_7] : memref<2x32xf32, #tpu.memory_space<vmem>>, vector<2x32xf32>
    %cst_8 = arith.constant dense<0.000000e+00> : vector<2x1xf32>
    %10 = tpu.matmul %9, %8, %cst_8 {dimension_numbers = #tpu.dot_dimension_numbers<[1], [0], [0], [1], [0, 0, 1, 1], [], []>} : vector<2x32xf32>, vector<32x1xf32>, vector<2x1xf32> -> vector<2x1xf32>
    %cst_9 = arith.constant 0.000000e+00 : f32
    %11 = vector.broadcast %cst_9 : f32 to vector<2x1xf32>
    %12 = arith.maximumf %10, %11 : vector<2x1xf32>
    %c0_10 = arith.constant 0 : index
    %c0_11 = arith.constant 0 : index
    %13 = vector.load %arg4[%c0_10, %c0_11] : memref<32x2xf32, #tpu.memory_space<vmem>>, vector<32x2xf32>
    %cst_12 = arith.constant dense<0.000000e+00> : vector<32x1xf32>
    %14 = tpu.matmul %13, %12, %cst_12 {dimension_numbers = #tpu.dot_dimension_numbers<[1], [0], [0], [1], [0, 0, 1, 1], [], []>} : vector<32x2xf32>, vector<2x1xf32>, vector<32x1xf32> -> vector<32x1xf32>
    %15 = arith.negf %14 : vector<32x1xf32>
    %16 = math.exp %15 : vector<32x1xf32>
    %cst_13 = arith.constant 1.000000e+00 : f32
    %17 = vector.broadcast %cst_13 : f32 to vector<32x1xf32>
    %18 = arith.addf %17, %16 : vector<32x1xf32>
    %19 = arith.divf %17, %18 : vector<32x1xf32>
    %20 = vector.broadcast %19 : vector<32x1xf32> to vector<32x64xf32>
    %21 = arith.mulf %4, %20 : vector<32x64xf32>
    %22 = arith.addf %21, %1 : vector<32x64xf32>
    %cst_14 = arith.constant 0.000000e+00 : f32
    %23 = vector.broadcast %cst_14 : f32 to vector<32x64xf32>
    %24 = arith.maximumf %22, %23 : vector<32x64xf32>
    %cst_15 = arith.constant dense<0.000000e+00> : vector<32xf32>
    %25 = vector.multi_reduction <add>, %24, %cst_15 [1] : vector<32x64xf32> to vector<32xf32>
    %26 = vector.shape_cast %25 : vector<32xf32> to vector<32x1xf32>
    %cst_16 = arith.constant 1.562500e-02 : f32
    %27 = vector.broadcast %cst_16 : f32 to vector<32x1xf32>
    %28 = arith.mulf %26, %27 : vector<32x1xf32>
    %c0_17 = arith.constant 0 : index
    %c0_18 = arith.constant 0 : index
    %29 = vector.load %arg5[%c0_17, %c0_18] : memref<32x128xbf16, #tpu.memory_space<vmem>>, vector<32x128xbf16>
    %30 = arith.extf %29 : vector<32x128xbf16> to vector<32x128xf32>
    %31 = vector.broadcast %28 : vector<32x1xf32> to vector<32x128xf32>
    %32 = arith.mulf %31, %30 : vector<32x128xf32>
    %cst_19 = arith.constant dense<0.000000e+00> : vector<128xf32>
    %33 = vector.multi_reduction <add>, %32, %cst_19 [0] : vector<32x128xf32> to vector<128xf32>
    %34 = vector.shape_cast %33 : vector<128xf32> to vector<1x128xf32>
    %c0_20 = arith.constant 0 : index
    %c0_21 = arith.constant 0 : index
    %35 = vector.load %arg6[%c0_20, %c0_21] : memref<1x128xf32, #tpu.memory_space<vmem>>, vector<1x128xf32>
    %36 = arith.addf %34, %35 : vector<1x128xf32>
    %c0_22 = arith.constant 0 : index
    %c0_23 = arith.constant 0 : index
    %c0_24 = arith.constant 0 : index
    %37 = vector.load %arg7[%c0_22, %c0_23, %c0_24] : memref<1x1x128xf32, #tpu.memory_space<vmem>>, vector<1x1x128xf32>
    %38 = vector.shape_cast %37 : vector<1x1x128xf32> to vector<1x128xf32>
    %39 = vector.shape_cast %36 : vector<1x128xf32> to vector<1x1x128xf32>
    tpu.vector_store %arg7[%c0_22, %c0_23, %c0_24], %39 {strides = array<i32>} : memref<1x1x128xf32, #tpu.memory_space<vmem>>, vector<1x1x128xf32>,
    return
  }
  func.func @transform_0(%arg0: i32) -> (i32, i32, i32) {
    %c0_i32 = arith.constant 0 : i32
    %c0_i32_0 = arith.constant 0 : i32
    %c0_i32_1 = arith.constant 0 : i32
    return %arg0, %c0_i32, %c0_i32_0 : i32, i32, i32
  }
  func.func @transform_1(%arg0: i32) -> (i32, i32) {
    %c0_i32 = arith.constant 0 : i32
    %c0_i32_0 = arith.constant 0 : i32
    %c0_i32_1 = arith.constant 0 : i32
    return %c0_i32, %c0_i32_0 : i32, i32
  }
  func.func @transform_2(%arg0: i32) -> (i32, i32) {
    %c0_i32 = arith.constant 0 : i32
    %c0_i32_0 = arith.constant 0 : i32
    %c0_i32_1 = arith.constant 0 : i32
    return %c0_i32, %c0_i32_0 : i32, i32
  }
  func.func @transform_3(%arg0: i32) -> (i32, i32) {
    %c0_i32 = arith.constant 0 : i32
    %c0_i32_0 = arith.constant 0 : i32
    %c0_i32_1 = arith.constant 0 : i32
    return %c0_i32, %c0_i32_0 : i32, i32
  }
  func.func @transform_4(%arg0: i32) -> (i32, i32) {
    %c0_i32 = arith.constant 0 : i32
    %c0_i32_0 = arith.constant 0 : i32
    %c0_i32_1 = arith.constant 0 : i32
    return %c0_i32, %c0_i32_0 : i32, i32
  }
  func.func @transform_5(%arg0: i32) -> (i32, i32) {
    %c0_i32 = arith.constant 0 : i32
    %c0_i32_0 = arith.constant 0 : i32
    %c0_i32_1 = arith.constant 0 : i32
    return %c0_i32, %c0_i32_0 : i32, i32
  }
  func.func @transform_6(%arg0: i32) -> (i32, i32, i32) {
    %c0_i32 = arith.constant 0 : i32
    %c0_i32_0 = arith.constant 0 : i32
    %c0_i32_1 = arith.constant 0 : i32
    return %arg0, %c0_i32, %c0_i32_0 : i32, i32, i32
  }
}

</mosaic_0001>

<llo_original>
// kernel: attribute_predictor_forward.1
$region0: #{attribute_predictor_forward.1}
  #allocation0 [shape = 'u32[]', space=smem, size = 0x4, offset = 0x4, fixed_abs, tag = 'smem constant byte address 0x4 - core index']
  #allocation1 [shape = 'u32[144,128]{1,0:T(1,128)}', space=vmem, size = 0x12000, scoped, tag = 'internal scratch']
  %s0 = inlined_call_operand.vmem [shape: f32[2,32,64], index: 0, kind: input, shape index: {}]
  %s1 = inlined_call_operand.vmem [shape: bf16[32,32], index: 1, kind: input, shape index: {}]
  %s2 = inlined_call_operand.vmem [shape: f32[2,32], index: 2, kind: input, shape index: {}]
  %s3 = inlined_call_operand.vmem [shape: f32[32,2], index: 3, kind: input, shape index: {}]
  %s4 = inlined_call_operand.vmem [shape: bf16[32,128], index: 4, kind: input, shape index: {}]
  %s5 = inlined_call_operand.vmem [shape: f32[1,128], index: 5, kind: input, shape index: {}]
  %s6 = inlined_call_operand.vmem [shape: f32[2,1,128], index: 6, kind: output, shape index: {}]
  %s7 = sld [smem:[#allocation0]]
  $region57: #{attribute_predictor_forward.1} parent=0
    _
  %s9 = ssub.s32 1, %s7
  %s10 = scalar_select 0, %s9, %s7
  loop: start=0, step=1, limit=4
  $region2: #{attribute_predictor_forward.1} parent=0 // loop_pre_header
    _
  $region3: #{attribute_predictor_forward.1} parent=0 // loop_header
    %s12 = sphi 0, %s16
    %p13 = scmp.ge.s32.totalorder %s12, 4
    %s22 = sphi 0, %s24
    %s25 = sphi 0, %s22
    %s26 = sphi 0, %s25
    %s42 = sphi 0, %s26
    %s46 = sphi 0, %s46
    %s48 = sphi 0, %s46
    %s49 = sphi 0, %s48
    %s63 = sphi 0, %s49
    %s67 = sphi 0, %s67
    %s69 = sphi 0, %s67
    %s70 = sphi 0, %s69
    %s84 = sphi 0, %s70
    %s88 = sphi 0, %s88
    %s90 = sphi 0, %s88
    %s91 = sphi 0, %s90
    %s105 = sphi 0, %s91
    %s109 = sphi 0, %s109
    %s111 = sphi 0, %s109
    %s112 = sphi 0, %s111
    %s126 = sphi 0, %s112
    %s130 = sphi 0, %s130
    %s132 = sphi 0, %s130
    %s133 = sphi 0, %s132
    %s147 = sphi 0, %s133
    %s153 = sphi 0, %s155
    %s156 = sphi 0, %s153
    %s157 = sphi 0, %s156
    %s173 = sphi 0, %s157
  $region4: #{attribute_predictor_forward.1} parent=0 // loop_header_branch
    %15 = sbr.rel (%p13) target = $region8
  $region5: #{attribute_predictor_forward.1} parent=0 // loop_body
    %s17 = ssub.s32 %s12, 1
    %s18 = ssub.s32 %s12, 2
    %s19 = sadd.s32 %s12, 1
    %s20 = ssub.s32 %s12, %s19
    %p21 = scmp.eq.s32.totalorder %s20, 0
    %s23 = sadd.s32 %s22, 1
    %s24 = scalar_select %p21, %s22, %s23
    %p27 = pneg %p21
    %p28 = scmp.eq.s32.totalorder %s12, 1
    %p29 = por %p27, %p28
    %p30 = scmp.ne.s32.totalorder %s22, %s25
    %p31 = scmp.eq.s32.totalorder %s12, 0
    %p32 = por %p30, %p31
    %p33 = scmp.ne.s32.totalorder %s22, %s25
    %p34 = scmp.eq.s32.totalorder %s17, 1
    %p35 = por %p33, %p34
    %p36 = scmp.ne.s32.totalorder %s25, %s26
    %p37 = scmp.eq.s32.totalorder %s17, 0
    %p38 = por %p36, %p37
    %p39 = scmp.ne.s32.totalorder %s25, %s26
    %p40 = scmp.eq.s32.totalorder %s18, 1
    %p41 = por %p39, %p40
    %p43 = scmp.ne.s32.totalorder %s26, %s42
    %p44 = scmp.eq.s32.totalorder %s18, 0
    %p45 = por %p43, %p44
    %s47 = sadd.s32 %s46, 1
    %p50 = scmp.eq.s32.totalorder %s12, 1
    %p51 = scmp.ne.s32.totalorder %s46, %s48
    %p52 = scmp.eq.s32.totalorder %s12, 0
    %p53 = por %p51, %p52
    %p54 = scmp.ne.s32.totalorder %s46, %s48
    %p55 = scmp.eq.s32.totalorder %s17, 1
    %p56 = por %p54, %p55
    %p57 = scmp.ne.s32.totalorder %s48, %s49
    %p58 = scmp.eq.s32.totalorder %s17, 0
    %p59 = por %p57, %p58
    %p60 = scmp.ne.s32.totalorder %s48, %s49
    %p61 = scmp.eq.s32.totalorder %s18, 1
    %p62 = por %p60, %p61
    %p64 = scmp.ne.s32.totalorder %s49, %s63
    %p65 = scmp.eq.s32.totalorder %s18, 0
    %p66 = por %p64, %p65
    %s68 = sadd.s32 %s67, 1
    %p71 = scmp.eq.s32.totalorder %s12, 1
    %p72 = scmp.ne.s32.totalorder %s67, %s69
    %p73 = scmp.eq.s32.totalorder %s12, 0
    %p74 = por %p72, %p73
    %p75 = scmp.ne.s32.totalorder %s67, %s69
    %p76 = scmp.eq.s32.totalorder %s17, 1
    %p77 = por %p75, %p76
    %p78 = scmp.ne.s32.totalorder %s69, %s70
    %p79 = scmp.eq.s32.totalorder %s17, 0
    %p80 = por %p78, %p79
    %p81 = scmp.ne.s32.totalorder %s69, %s70
    %p82 = scmp.eq.s32.totalorder %s18, 1
    %p83 = por %p81, %p82
    %p85 = scmp.ne.s32.totalorder %s70, %s84
    %p86 = scmp.eq.s32.totalorder %s18, 0
    %p87 = por %p85, %p86
    %s89 = sadd.s32 %s88, 1
    %p92 = scmp.eq.s32.totalorder %s12, 1
    %p93 = scmp.ne.s32.totalorder %s88, %s90
    %p94 = scmp.eq.s32.totalorder %s12, 0
    %p95 = por %p93, %p94
    %p96 = scmp.ne.s32.totalorder %s88, %s90
    %p97 = scmp.eq.s32.totalorder %s17, 1
    %p98 = por %p96, %p97
    %p99 = scmp.ne.s32.totalorder %s90, %s91
    %p100 = scmp.eq.s32.totalorder %s17, 0
    %p101 = por %p99, %p100
    %p102 = scmp.ne.s32.totalorder %s90, %s91
    %p103 = scmp.eq.s32.totalorder %s18, 1
    %p104 = por %p102, %p103
    %p106 = scmp.ne.s32.totalorder %s91, %s105
    %p107 = scmp.eq.s32.totalorder %s18, 0
    %p108 = por %p106, %p107
    %s110 = sadd.s32 %s109, 1
    %p113 = scmp.eq.s32.totalorder %s12, 1
    %p114 = scmp.ne.s32.totalorder %s109, %s111
    %p115 = scmp.eq.s32.totalorder %s12, 0
    %p116 = por %p114, %p115
    %p117 = scmp.ne.s32.totalorder %s109, %s111
    %p118 = scmp.eq.s32.totalorder %s17, 1
    %p119 = por %p117, %p118
    %p120 = scmp.ne.s32.totalorder %s111, %s112
    %p121 = scmp.eq.s32.totalorder %s17, 0
    %p122 = por %p120, %p121
    %p123 = scmp.ne.s32.totalorder %s111, %s112
    %p124 = scmp.eq.s32.totalorder %s18, 1
    %p125 = por %p123, %p124
    %p127 = scmp.ne.s32.totalorder %s112, %s126
    %p128 = scmp.eq.s32.totalorder %s18, 0
    %p129 = por %p127, %p128
    %s131 = sadd.s32 %s130, 1
    %p134 = scmp.eq.s32.totalorder %s12, 1
    %p135 = scmp.ne.s32.totalorder %s130, %s132
    %p136 = scmp.eq.s32.totalorder %s12, 0
    %p137 = por %p135, %p136
    %p138 = scmp.ne.s32.totalorder %s130, %s132
    %p139 = scmp.eq.s32.totalorder %s17, 1
    %p140 = por %p138, %p139
    %p141 = scmp.ne.s32.totalorder %s132, %s133
    %p142 = scmp.eq.s32.totalorder %s17, 0
    %p143 = por %p141, %p142
    %p144 = scmp.ne.s32.totalorder %s132, %s133
    %p145 = scmp.eq.s32.totalorder %s18, 1
    %p146 = por %p144, %p145
    %p148 = scmp.ne.s32.totalorder %s133, %s147
    %p149 = scmp.eq.s32.totalorder %s18, 0
    %p150 = por %p148, %p149
    %s151 = ssub.s32 %s12, %s19
    %p152 = scmp.eq.s32.totalorder %s151, 0
    %s154 = sadd.s32 %s153, 1
    %s155 = scalar_select %p152, %s153, %s154
    %p158 = pneg %p152
    %p159 = scmp.eq.s32.totalorder %s12, 1
    %p160 = por %p158, %p159
    %p161 = scmp.ne.s32.totalorder %s153, %s156
    %p162 = scmp.eq.s32.totalorder %s12, 0
    %p163 = por %p161, %p162
    %p164 = scmp.ne.s32.totalorder %s153, %s156
    %p165 = scmp.eq.s32.totalorder %s17, 1
    %p166 = por %p164, %p165
    %p167 = scmp.ne.s32.totalorder %s156, %s157
    %p168 = scmp.eq.s32.totalorder %s17, 0
    %p169 = por %p167, %p168
    %p170 = scmp.ne.s32.totalorder %s156, %s157
    %p171 = scmp.eq.s32.totalorder %s18, 1
    %p172 = por %p170, %p171
    %p174 = scmp.ne.s32.totalorder %s157, %s173
    %p175 = scmp.eq.s32.totalorder %s18, 0
    %p176 = por %p174, %p175
    %p177 = scmp.le.s32.totalorder 1, %s12
    %p178 = scmp.lt.s32.totalorder %s12, 3
    %p179 = pnand %p177, %p178
    %p180 = pneg %p179
    // Predicated region
    $region9: #{attribute_predictor_forward.1} parent=5 // pred_check
      _
    $region10: #{attribute_predictor_forward.1} parent=5 // pred_check_branch
      %182 = sbr.rel (%p179) target = $region12
    $region11: #{attribute_predictor_forward.1} parent=5 // pred_region
      %s183 = ssub.s32 %s12, 1
      // Predicated region
      $region13: #{attribute_predictor_forward.1} parent=11 // pred_check
        %p184 = pneg %p59
      $region14: #{attribute_predictor_forward.1} parent=11 // pred_check_branch
        %186 = sbr.rel (%p184) target = $region16
      $region15: #{attribute_predictor_forward.1} parent=11 // pred_region
        _
      $region16: #{attribute_predictor_forward.1} parent=11 // pred_fallthru
        _
      // Predicated region
      $region17: #{attribute_predictor_forward.1} parent=11 // pred_check
        %p187 = pneg %p80
      $region18: #{attribute_predictor_forward.1} parent=11 // pred_check_branch
        %189 = sbr.rel (%p187) target = $region20
      $region19: #{attribute_predictor_forward.1} parent=11 // pred_region
        _
      $region20: #{attribute_predictor_forward.1} parent=11 // pred_fallthru
        _
      // Predicated region
      $region21: #{attribute_predictor_forward.1} parent=11 // pred_check
        %p190 = pneg %p101
      $region22: #{attribute_predictor_forward.1} parent=11 // pred_check_branch
        %192 = sbr.rel (%p190) target = $region24
      $region23: #{attribute_predictor_forward.1} parent=11 // pred_region
        _
      $region24: #{attribute_predictor_forward.1} parent=11 // pred_fallthru
        _
      // Predicated region
      $region25: #{attribute_predictor_forward.1} parent=11 // pred_check
        %p193 = pneg %p122
      $region26: #{attribute_predictor_forward.1} parent=11 // pred_check_branch
        %195 = sbr.rel (%p193) target = $region28
      $region27: #{attribute_predictor_forward.1} parent=11 // pred_region
        _
      $region28: #{attribute_predictor_forward.1} parent=11 // pred_fallthru
        _
      // Predicated region
      $region29: #{attribute_predictor_forward.1} parent=11 // pred_check
        %p196 = pneg %p143
      $region30: #{attribute_predictor_forward.1} parent=11 // pred_check_branch
        %198 = sbr.rel (%p196) target = $region32
      $region31: #{attribute_predictor_forward.1} parent=11 // pred_region
        _
      $region32: #{attribute_predictor_forward.1} parent=11 // pred_fallthru
        _
    $region12: #{attribute_predictor_forward.1} parent=5 // pred_fallthru
      _
    %p199 = scmp.lt.s32.totalorder %s12, 2
    // Predicated region
    $region33: #{attribute_predictor_forward.1} parent=5 // pred_check
      %p200 = pneg %p199
    $region34: #{attribute_predictor_forward.1} parent=5 // pred_check_branch
      %202 = sbr.rel (%p200) target = $region36
    $region35: #{attribute_predictor_forward.1} parent=5 // pred_region
      // Predicated region
      $region37: #{attribute_predictor_forward.1} parent=35 // pred_check
        %p203 = pneg %p32
      $region38: #{attribute_predictor_forward.1} parent=35 // pred_check_branch
        %205 = sbr.rel (%p203) target = $region40
      $region39: #{attribute_predictor_forward.1} parent=35 // pred_region
        %p206 = scmp.lt.s32.totalorder %s12, 1
        %s207 = scalar_select %p206, %s12, 1
        %s208 = smul.addr %s207, 4
        %s209 = smul.addr %s208, 8
        %s210 = scalar_lea.vmem %s0, %s209
      $region40: #{attribute_predictor_forward.1} parent=35 // pred_fallthru
        _
    $region36: #{attribute_predictor_forward.1} parent=5 // pred_fallthru
      _
    %p211 = scmp.le.s32.totalorder 1, %s12
    %p212 = scmp.lt.s32.totalorder %s12, 3
    %p213 = pnand %p211, %p212
    %p214 = pneg %p213
    // Predicated region
    $region41: #{attribute_predictor_forward.1} parent=5 // pred_check
      _
    $region42: #{attribute_predictor_forward.1} parent=5 // pred_check_branch
      %216 = sbr.rel (%p213) target = $region44
    $region43: #{attribute_predictor_forward.1} parent=5 // pred_region
      %s217 = ssub.s32 %s12, 1
      %p218 = scmp.lt.s32.totalorder %s17, 1
      %s219 = scalar_select %p218, %s17, 1
      %s220 = smul.addr %s219, 4
      %s221 = smul.addr %s220, 8
      %s222 = scalar_lea.vmem %s0, %s221
      %p223 = pneg %p38
      %p224 = pneg %p35
      %p225 = pneg %p59
      %p226 = pneg %p56
      %p227 = pneg %p80
      %p228 = pneg %p77
      %p229 = pneg %p101
      %p230 = pneg %p98
      %p231 = pneg %p122
      %p232 = pneg %p119
      %p233 = pneg %p143
      %p234 = pneg %p140
      %p235 = pneg %p169
      %p236 = pneg %p166
      %p237 = scmp.lt.s32.totalorder %s17, 1
      %s238 = scalar_select %p237, %s17, 1
      %s239 = scalar_lea.vmem %s6, %s238
      %p240 = scmp.lt.s32.totalorder %s17, 1
      %s241 = scalar_select %p240, %s17, 1
      %s242 = smul.addr %s241, 4
      %s243 = smul.addr %s242, 8
      %s244 = scalar_lea.vmem %s0, %s243
      %p245 = scmp.lt.s32.totalorder %s17, 1
      %s246 = scalar_select %p245, %s17, 1
      %s247 = scalar_lea.vmem %s6, %s246
      %v249 = vld [vmem:[%s244] sm:$0xff]
      %v250 = vld [vmem:[%s244 + $0x8] sm:$0xff]
      %v251 = vld [vmem:[%s244 + $0x10] sm:$0xff]
      %v252 = vld [vmem:[%s244 + $0x18] sm:$0xff]
      %v253 = vld [vmem:[%s1] sm:$0xf]
      %v254 = vld [vmem:[%s1 + $0x4] sm:$0xf]
      %v255 = vld [vmem:[%s1 + $0x8] sm:$0xf]
      %v256 = vld [vmem:[%s1 + $0xc] sm:$0xf]
      %v257 = vpack.c.bf16 %v250, %v249
      %v258 = vpack.c.bf16 %v252, %v251
      %v263 = vunpack.c.l.b16 %v253
      %v264 = vunpack.c.l.b16 %v254
      %v265 = vunpack.c.l.b16 %v255
      %v266 = vunpack.c.l.b16 %v256
      %v267 = vpack.c.b16 %v264, %v263
      %v268 = vpack.c.b16 %v266, %v265
      %vm269 = vcmask 261120
      %v271 = vsel %vm269, %v267, 0
      %v274 = vsel %vm269, %v268, 0
      %276 = vmatprep.subr.bf16.mxu0 0
      %277 = vmatpush1.bf16.msra.mxu0 %v257
      %278 = vmatprep.subr.bf16.mxu0 0
      %279 = vmatpush1.bf16.msra.mxu0 %v258
      %280 = vmatprep.subr.bf16.mxu0 0
      %281 = vmatpush1.bf16.msra.mxu0 0
      %282 = vmatprep.subr.bf16.mxu0 0
      %283 = vmatpush1.bf16.msra.mxu0 0
      %284 = vmatprep.subr.bf16.mxu0 0
      %285 = vmatpush1.bf16.msra.mxu0 0
      %286 = vmatprep.subr.bf16.mxu0 0
      %287 = vmatpush1.bf16.msra.mxu0 0
      %288 = vmatprep.subr.bf16.mxu0 0
      %289 = vmatpush1.bf16.msra.mxu0 0
      %290 = vmatprep.subr.bf16.mxu0 0
      %291 = vmatpush1.bf16.msra.mxu0 0
      %292 = vmatprep.subr.bf16.mxu0 0
      %293 = vmatpush1.bf16.msra.mxu0 0
      %294 = vmatprep.subr.bf16.mxu0 0
      %295 = vmatpush1.bf16.msra.mxu0 0
      %296 = vmatprep.subr.bf16.mxu0 0
      %297 = vmatpush1.bf16.msra.mxu0 0
      %298 = vmatprep.subr.bf16.mxu0 0
      %299 = vmatpush1.bf16.msra.mxu0 0
      %300 = vmatprep.subr.bf16.mxu0 0
      %301 = vmatpush1.bf16.msra.mxu0 0
      %302 = vmatprep.subr.bf16.mxu0 0
      %303 = vmatpush1.bf16.msra.mxu0 0
      %304 = vmatprep.subr.bf16.mxu0 0
      %305 = vmatpush1.bf16.msra.mxu0 0
      %306 = vmatprep.subr.bf16.mxu0 0
      %307 = vmatpush1.bf16.msra.mxu0 0
      %308 = vmatprep.mubr.bf16.mxu0 0
      %309 = vmatmul.mubr.bf16.gmra.mrb[0].mxu0 %v271
      %v310 = vpop.f32.mrb[0].mxu0
      %v311 = vadd.f32 0.0, %v310
      %v312 = vpop.f32.mrb[0].mxu0
      %v313 = vpop.f32.mrb[0].mxu0
      %v314 = vadd.f32 0.0, %v313
      %v315 = vpop.f32.mrb[0].mxu0
      %316 = vmatprep.mubr.bf16.mxu0 0
      %317 = vmatmul.mubr.bf16.gmra.mrb[0].mxu0 %v274
      %v318 = vpop.f32.mrb[0].mxu0
      %v319 = vadd.f32 0.0, %v318
      %v320 = vpop.f32.mrb[0].mxu0
      %v321 = vpop.f32.mrb[0].mxu0
      %v322 = vadd.f32 0.0, %v321
      %v323 = vpop.f32.mrb[0].mxu0
      %324 = vdwg.mxu0
      %vm325 = vcmask 523264
      %v326 = vsel %vm325, %v311, 0.0
      %327 = vadd.xlane.f32.xlu0 %v326
      %v328 = vpop.xlane.xlu0 %327
      %v329 = vsel %vm325, %v314, 0.0
      %330 = vadd.xlane.f32.xlu0 %v329
      %v331 = vpop.xlane.xlu0 %330
      %v332 = vsel %vm325, %v319, 0.0
      %333 = vadd.xlane.f32.xlu0 %v332
      %v334 = vpop.xlane.xlu0 %333
      %v335 = vsel %vm325, %v322, 0.0
      %336 = vadd.xlane.f32.xlu0 %v335
      %v337 = vpop.xlane.xlu0 %336
      %v338 = vmul.f32 %v328, 0.015625
      %v339 = vmul.f32 %v331, 0.015625
      %v340 = vmul.f32 %v334, 0.015625
      %v341 = vmul.f32 %v337, 0.015625
      %v342 = vld [vmem:[%s2] sm:$0x3]
      %v344 = vsel %vm269, %v342, 0
      %346 = vmatprep.subr.mxu0 0.0
      %347 = vmatpush1.msra.mxu0 %v338
      %348 = vmatprep.subr.mxu0 0.0
      %349 = vmatpush1.msra.mxu0 %v339
      %350 = vmatprep.subr.mxu0 0.0
      %351 = vmatpush1.msra.mxu0 %v340
      %352 = vmatprep.subr.mxu0 0.0
      %353 = vmatpush1.msra.mxu0 %v341
      %354 = vmatprep.subr.mxu0 0.0
      %355 = vmatpush1.msra.mxu0 0.0
      %356 = vmatprep.subr.mxu0 0.0
      %357 = vmatpush1.msra.mxu0 0.0
      %358 = vmatprep.subr.mxu0 0.0
      %359 = vmatpush1.msra.mxu0 0.0
      %360 = vmatprep.subr.mxu0 0.0
      %361 = vmatpush1.msra.mxu0 0.0
      %362 = vmatprep.subr.mxu0 0.0
      %363 = vmatpush1.msra.mxu0 0.0
      %364 = vmatprep.subr.mxu0 0.0
      %365 = vmatpush1.msra.mxu0 0.0
      %366 = vmatprep.subr.mxu0 0.0
      %367 = vmatpush1.msra.mxu0 0.0
      %368 = vmatprep.subr.mxu0 0.0
      %369 = vmatpush1.msra.mxu0 0.0
      %370 = vmatprep.subr.mxu0 0.0
      %371 = vmatpush1.msra.mxu0 0.0
      %372 = vmatprep.subr.mxu0 0.0
      %373 = vmatpush1.msra.mxu0 0.0
      %374 = vmatprep.subr.mxu0 0.0
      %375 = vmatpush1.msra.mxu0 0.0
      %376 = vmatprep.subr.mxu0 0.0
      %377 = vmatpush1.msra.mxu0 0.0
      %378 = vmatprep.subr.mxu0 0.0
      %379 = vmatpush1.msra.mxu0 0.0
      %380 = vmatprep.subr.mxu0 0.0
      %381 = vmatpush1.msra.mxu0 0.0
      %382 = vmatprep.subr.mxu0 0.0
      %383 = vmatpush1.msra.mxu0 0.0
      %384 = vmatprep.subr.mxu0 0.0
      %385 = vmatpush1.msra.mxu0 0.0
      %386 = vmatprep.subr.mxu0 0.0
      %387 = vmatpush1.msra.mxu0 0.0
      %388 = vmatprep.subr.mxu0 0.0
      %389 = vmatpush1.msra.mxu0 0.0
      %390 = vmatprep.subr.mxu0 0.0
      %391 = vmatpush1.msra.mxu0 0.0
      %392 = vmatprep.subr.mxu0 0.0
      %393 = vmatpush1.msra.mxu0 0.0
      %394 = vmatprep.subr.mxu0 0.0
      %395 = vmatpush1.msra.mxu0 0.0
      %396 = vmatprep.subr.mxu0 0.0
      %397 = vmatpush1.msra.mxu0 0.0
      %398 = vmatprep.subr.mxu0 0.0
      %399 = vmatpush1.msra.mxu0 0.0
      %400 = vmatprep.subr.mxu0 0.0
      %401 = vmatpush1.msra.mxu0 0.0
      %402 = vmatprep.subr.mxu0 0.0
      %403 = vmatpush1.msra.mxu0 0.0
      %404 = vmatprep.subr.mxu0 0.0
      %405 = vmatpush1.msra.mxu0 0.0
      %406 = vmatprep.subr.mxu0 0.0
      %407 = vmatpush1.msra.mxu0 0.0
      %408 = vmatprep.subr.mxu0 0.0
      %409 = vmatpush1.msra.mxu0 0.0
      %410 = vmatprep.mubr.f32.mxu0 0.0
      %411 = vmatmul.mubr.f32.gmra.mrb[0].mxu0 %v344
      %v412 = vpop.f32.mrb[0].mxu0
      %v413 = vadd.f32 0.0, %v412
      %v414 = vpop.f32.mrb[0].mxu0
      %415 = vdwg.mxu0
      %v416 = vmax.f32 %v413, 0.0
      %v417 = vld [vmem:[%s3] sm:$0xff]
      %v418 = vld [vmem:[%s3 + $0x8] sm:$0xff]
      %v419 = vld [vmem:[%s3 + $0x10] sm:$0xff]
      %v420 = vld [vmem:[%s3 + $0x18] sm:$0xff]
      %vm421 = vcmask 15360
      %v423 = vsel %vm421, %v417, 0
      %v426 = vsel %vm421, %v418, 0
      %v429 = vsel %vm421, %v419, 0
      %v432 = vsel %vm421, %v420, 0
      %vm434 = vcmask 1041408
      %v436 = vsel %vm434, %v416, 0
      %438 = vmatprep.subr.mxu0 0.0
      %439 = vmatpush1.msra.mxu0 %v436
      %440 = vmatprep.subr.mxu0 0.0
      %441 = vmatpush1.msra.mxu0 0.0
      %442 = vmatprep.subr.mxu0 0.0
      %443 = vmatpush1.msra.mxu0 0.0
      %444 = vmatprep.subr.mxu0 0.0
      %445 = vmatpush1.msra.mxu0 0.0
      %446 = vmatprep.subr.mxu0 0.0
      %447 = vmatpush1.msra.mxu0 0.0
      %448 = vmatprep.subr.mxu0 0.0
      %449 = vmatpush1.msra.mxu0 0.0
      %450 = vmatprep.subr.mxu0 0.0
      %451 = vmatpush1.msra.mxu0 0.0
      %452 = vmatprep.subr.mxu0 0.0
      %453 = vmatpush1.msra.mxu0 0.0
      %454 = vmatprep.subr.mxu0 0.0
      %455 = vmatpush1.msra.mxu0 0.0
      %456 = vmatprep.subr.mxu0 0.0
      %457 = vmatpush1.msra.mxu0 0.0
      %458 = vmatprep.subr.mxu0 0.0
      %459 = vmatpush1.msra.mxu0 0.0
      %460 = vmatprep.subr.mxu0 0.0
      %461 = vmatpush1.msra.mxu0 0.0
      %462 = vmatprep.subr.mxu0 0.0
      %463 = vmatpush1.msra.mxu0 0.0
      %464 = vmatprep.subr.mxu0 0.0
      %465 = vmatpush1.msra.mxu0 0.0
      %466 = vmatprep.subr.mxu0 0.0
      %467 = vmatpush1.msra.mxu0 0.0
      %468 = vmatprep.subr.mxu0 0.0
      %469 = vmatpush1.msra.mxu0 0.0
      %470 = vmatprep.subr.mxu0 0.0
      %471 = vmatpush1.msra.mxu0 0.0
      %472 = vmatprep.subr.mxu0 0.0
      %473 = vmatpush1.msra.mxu0 0.0
      %474 = vmatprep.subr.mxu0 0.0
      %475 = vmatpush1.msra.mxu0 0.0
      %476 = vmatprep.subr.mxu0 0.0
      %477 = vmatpush1.msra.mxu0 0.0
      %478 = vmatprep.subr.mxu0 0.0
      %479 = vmatpush1.msra.mxu0 0.0
      %480 = vmatprep.subr.mxu0 0.0
      %481 = vmatpush1.msra.mxu0 0.0
      %482 = vmatprep.subr.mxu0 0.0
      %483 = vmatpush1.msra.mxu0 0.0
      %484 = vmatprep.subr.mxu0 0.0
      %485 = vmatpush1.msra.mxu0 0.0
      %486 = vmatprep.subr.mxu0 0.0
      %487 = vmatpush1.msra.mxu0 0.0
      %488 = vmatprep.subr.mxu0 0.0
      %489 = vmatpush1.msra.mxu0 0.0
      %490 = vmatprep.subr.mxu0 0.0
      %491 = vmatpush1.msra.mxu0 0.0
      %492 = vmatprep.subr.mxu0 0.0
      %493 = vmatpush1.msra.mxu0 0.0
      %494 = vmatprep.subr.mxu0 0.0
      %495 = vmatpush1.msra.mxu0 0.0
      %496 = vmatprep.subr.mxu0 0.0
      %497 = vmatpush1.msra.mxu0 0.0
      %498 = vmatprep.subr.mxu0 0.0
      %499 = vmatpush1.msra.mxu0 0.0
      %500 = vmatprep.subr.mxu0 0.0
      %501 = vmatpush1.msra.mxu0 0.0
      %502 = vmatprep.mubr.f32.mxu0 0.0
      %503 = vmatmul.mubr.f32.gmra.mrb[0].mxu0 %v423
      %v504 = vpop.f32.mrb[0].mxu0
      %v505 = vadd.f32 0.0, %v504
      %v506 = vpop.f32.mrb[0].mxu0
      %507 = vmatprep.mubr.f32.mxu0 0.0
      %508 = vmatmul.mubr.f32.gmra.mrb[0].mxu0 %v426
      %v509 = vpop.f32.mrb[0].mxu0
      %v510 = vadd.f32 0.0, %v509
      %v511 = vpop.f32.mrb[0].mxu0
      %512 = vmatprep.mubr.f32.mxu0 0.0
      %513 = vmatmul.mubr.f32.gmra.mrb[0].mxu0 %v429
      %v514 = vpop.f32.mrb[0].mxu0
      %v515 = vadd.f32 0.0, %v514
      %v516 = vpop.f32.mrb[0].mxu0
      %517 = vmatprep.mubr.f32.mxu0 0.0
      %518 = vmatmul.mubr.f32.gmra.mrb[0].mxu0 %v432
      %v519 = vpop.f32.mrb[0].mxu0
      %v520 = vadd.f32 0.0, %v519
      %v521 = vpop.f32.mrb[0].mxu0
      %522 = vdwg.mxu0
      %v523 = vxor.u32 %v505, 2147483648
      %v524 = vxor.u32 %v510, 2147483648
      %v525 = vxor.u32 %v515, 2147483648
      %v526 = vxor.u32 %v520, 2147483648
      %v527 = vmul.f32 %v523, 1.442695
      %v528 = vpow.pop %v527
      %v529 = vmul.f32 %v524, 1.442695
      %v530 = vpow.pop %v529
      %v531 = vmul.f32 %v525, 1.442695
      %v532 = vpow.pop %v531
      %v533 = vmul.f32 %v526, 1.442695
      %v534 = vpow.pop %v533
      %v535 = vadd.f32 %v528, 1.0
      %v536 = vadd.f32 %v530, 1.0
      %v537 = vadd.f32 %v532, 1.0
      %v538 = vadd.f32 %v534, 1.0
      %v539 = vrcp.pop %v535
      %v540 = vmul.f32 1.0, %v539
      %v541 = vrcp.pop %v536
      %v542 = vmul.f32 1.0, %v541
      %v543 = vrcp.pop %v537
      %v544 = vmul.f32 1.0, %v543
      %v545 = vrcp.pop %v538
      %v546 = vmul.f32 1.0, %v545
      %548 = vset.pattern.permute.xlu0 0
      %549 = vperm.xlu0 %548, %v540
      %v550 = vpop.permute.xlu0 %549
      %553 = vset.pattern.permute.xlu0 0
      %554 = vperm.xlu0 %553, %v542
      %v555 = vpop.permute.xlu0 %554
      %558 = vset.pattern.permute.xlu0 0
      %559 = vperm.xlu0 %558, %v544
      %v560 = vpop.permute.xlu0 %559
      %563 = vset.pattern.permute.xlu0 0
      %564 = vperm.xlu0 %563, %v546
      %v565 = vpop.permute.xlu0 %564
      %v567 = vmul.f32 %v311, %v550
      %v568 = vmul.f32 %v314, %v555
      %v569 = vmul.f32 %v319, %v560
      %v570 = vmul.f32 %v322, %v565
      %v571 = vadd.f32 %v567, %v249
      %v572 = vadd.f32 %v568, %v250
      %v573 = vadd.f32 %v569, %v251
      %v574 = vadd.f32 %v570, %v252
      %v575 = vmax.f32 %v571, 0.0
      %v576 = vmax.f32 %v572, 0.0
      %v577 = vmax.f32 %v573, 0.0
      %v578 = vmax.f32 %v574, 0.0
      %v579 = vsel %vm325, %v575, 0.0
      %580 = vadd.xlane.f32.xlu0 %v579
      %v581 = vpop.xlane.xlu0 %580
      %v582 = vsel %vm325, %v576, 0.0
      %583 = vadd.xlane.f32.xlu0 %v582
      %v584 = vpop.xlane.xlu0 %583
      %v585 = vsel %vm325, %v577, 0.0
      %586 = vadd.xlane.f32.xlu0 %v585
      %v587 = vpop.xlane.xlu0 %586
      %v588 = vsel %vm325, %v578, 0.0
      %589 = vadd.xlane.f32.xlu0 %v588
      %v590 = vpop.xlane.xlu0 %589
      %v591 = vmul.f32 %v581, 0.015625
      %v592 = vmul.f32 %v584, 0.015625
      %v593 = vmul.f32 %v587, 0.015625
      %v594 = vmul.f32 %v590, 0.015625
      %v595 = vld [vmem:[%s4] sm:$0xf]
      %v596 = vld [vmem:[%s4 + $0x4] sm:$0xf]
      %v597 = vld [vmem:[%s4 + $0x8] sm:$0xf]
      %v598 = vld [vmem:[%s4 + $0xc] sm:$0xf]
      %v599 = vunpack.c.l.bf16 %v595
      %v600 = vunpack.c.l.bf16 %v596
      %v601 = vunpack.c.l.bf16 %v597
      %v602 = vunpack.c.l.bf16 %v598
      %v603 = vmul.f32 %v591, %v599
      %v604 = vmul.f32 %v592, %v600
      %v605 = vmul.f32 %v593, %v601
      %v606 = vmul.f32 %v594, %v602
      %v607 = vadd.f32 %v603, %v604
      %v608 = vadd.f32 %v607, %v605
      %v609 = vadd.f32 %v608, %v606
      %v610 = vrot.slane %v609, 4
      %v611 = vadd.f32 %v609, %v610
      %v612 = vrot.slane %v611, 2
      %v613 = vadd.f32 %v611, %v612
      %v614 = vrot.slane %v613, 1
      %v615 = vadd.f32 %v613, %v614
      %v616 = vld [vmem:[%s5] sm:$0x1]
      %v617 = vadd.f32 %v615, %v616
      %618 = vst [vmem:[%s247] sm:$0x1] %v617
      %p619 = scmp.lt.s32.totalorder %s17, 1
      %s620 = scalar_select %p619, %s17, 1
      %s621 = scalar_lea.vmem %s6, %s620
      // Predicated region
      $region45: #{attribute_predictor_forward.1} parent=43 // pred_check
        %p622 = pneg %p166
      $region46: #{attribute_predictor_forward.1} parent=43 // pred_check_branch
        %624 = sbr.rel (%p622) target = $region48
      $region47: #{attribute_predictor_forward.1} parent=43 // pred_region
        _
      $region48: #{attribute_predictor_forward.1} parent=43 // pred_fallthru
        _
    $region44: #{attribute_predictor_forward.1} parent=5 // pred_fallthru
      _
    %p625 = scmp.le.s32.totalorder 2, %s12
    // Predicated region
    $region49: #{attribute_predictor_forward.1} parent=5 // pred_check
      %p626 = pneg %p625
    $region50: #{attribute_predictor_forward.1} parent=5 // pred_check_branch
      %628 = sbr.rel (%p626) target = $region52
    $region51: #{attribute_predictor_forward.1} parent=5 // pred_region
      %s629 = ssub.s32 %s12, 2
      // Predicated region
      $region53: #{attribute_predictor_forward.1} parent=51 // pred_check
        %p630 = pneg %p172
      $region54: #{attribute_predictor_forward.1} parent=51 // pred_check_branch
        %632 = sbr.rel (%p630) target = $region56
      $region55: #{attribute_predictor_forward.1} parent=51 // pred_region
        %p633 = scmp.lt.s32.totalorder %s18, 1
        %s634 = scalar_select %p633, %s18, 1
        %s635 = scalar_lea.vmem %s6, %s634
      $region56: #{attribute_predictor_forward.1} parent=51 // pred_fallthru
        _
    $region52: #{attribute_predictor_forward.1} parent=5 // pred_fallthru
      _
  $region6: #{attribute_predictor_forward.1} parent=0 // loop_footer
    %s16 = sadd.s32 1, %s12
  $region7: #{attribute_predictor_forward.1} parent=0 // loop_footer_branch
    %11 = sbr.rel target = $region3
  $region8: #{attribute_predictor_forward.1} parent=0 // loop_exit
    _

</llo_original>
